<compile_context>
chip_gen: v5e
topology: v5e:2x2
jax: 0.10.0
libtpu: 0.0.40
codegen_flags: <defaults>
</compile_context>

<pallas_src>
import functools

import jax
import jax.numpy as jnp
from jax import lax
from jax.experimental import pallas as pl
from jax.experimental.pallas import tpu as pltpu


def bert_embeddings_kernel(ids_ref, tts_ref,          # SMEM (scalar prefetch): [Mp] int32
                           pos_ref,                   # VMEM: (tm, H) position rows for tile
                           word_ref,                   # VMEM: (V, H) word table (resident)
                           ttemb_ref,                  # VMEM: (T, H) token-type table
                           gamma_ref, beta_ref,        # VMEM: (1, H) LayerNorm affine
                           o_ref,                      # VMEM: (tm, H) output tile
                           acc_ref,                    # VMEM scratch: (tm, H) f32
                           *, tm, eps):
    base = pl.program_id(0) * tm

    # Row gather: scalar id read from SMEM drives a dynamic (1, H) row load from the
    # resident tables; word + token-type rows are fused into one pass over the tile.
    def gather_row(r, carry):
        wid = ids_ref[base + r]
        tid = tts_ref[base + r]
        row = (word_ref[pl.ds(wid, 1), :].astype(jnp.float32)
               + ttemb_ref[pl.ds(tid, 1), :].astype(jnp.float32))
        acc_ref[pl.ds(r, 1), :] = row
        return carry

    lax.fori_loop(0, tm, gather_row, 0)

    # Positions arrive as a contiguous (tm, H) DMA'd slab -> just add.
    emb = acc_ref[...] + pos_ref[...].astype(jnp.float32)

    # LayerNorm over hidden axis, one-pass stats in f32; rsqrt -> EUP slot.
    inv_h = 1.0 / emb.shape[-1]
    s1 = jnp.sum(emb, axis=-1, keepdims=True)
    s2 = jnp.sum(emb * emb, axis=-1, keepdims=True)
    mean = s1 * inv_h
    var = s2 * inv_h - mean * mean
    inv = lax.rsqrt(var + eps)
    out = (emb - mean) * inv * gamma_ref[...].astype(jnp.float32) \
        + beta_ref[...].astype(jnp.float32)

    # TODO(synk): training-mode dropout (RNG mask) omitted; eval mode = identity.
    o_ref[...] = out.astype(o_ref.dtype)


def bert_embeddings(input_ids, token_type_ids, position_ids,
                    word_emb, pos_emb, tt_emb, gamma, beta,
                    *, eps=1e-12, tm=256):
    """BertEmbeddings forward (eval mode).

    input_ids / token_type_ids / position_ids: [B, S] int (latter two may be None)
    word_emb: [V, H]; pos_emb: [P, H]; tt_emb: [T, H]; gamma/beta: [H]
    Returns [B, S, H] in word_emb.dtype.
    tm: row tile; 256-512 recommended on v6e/v7x, 128-256 on v5e (multiple of 8).
    """
    B, S = input_ids.shape
    H = word_emb.shape[1]
    M = B * S

    if token_type_ids is None:
        token_type_ids = jnp.zeros((B, S), jnp.int32)

    ids = input_ids.reshape(M).astype(jnp.int32)
    tts = token_type_ids.reshape(M).astype(jnp.int32)

    # Row tile: multiple of 8, no larger than the (padded) token count.
    tm = max(8, (min(tm, M + (-M) % 8) // 8) * 8)
    Mp = ((M + tm - 1) // tm) * tm
    if Mp != M:
        z = jnp.zeros((Mp - M,), jnp.int32)
        ids = jnp.concatenate([ids, z])
        tts = jnp.concatenate([tts, z])

    g2 = gamma.reshape(1, H)
    b2 = beta.reshape(1, H)

    # Position rows: fast path feeds the position table directly (token-major layout =>
    # positions of tile i are the contiguous range starting at (i*tm) % S, a single
    # perfectly-pipelined DMA).  Otherwise pre-gather a [Mp, H] slab in the wrapper.
    fast_pos = (position_ids is None) and (S % tm == 0) and (pos_emb.shape[0] >= S)
    if fast_pos:
        blocks_per_seq = S // tm
        pos_arg = pos_emb
        pos_spec = pl.BlockSpec((tm, H), lambda i, ids, tts: (i % blocks_per_seq, 0))
    else:
        # TODO(synk): this wrapper-side gather could also move into the kernel via the
        # same SMEM-driven row gather used for the word ids.
        if position_ids is None:
            position_ids = jnp.broadcast_to(
                jnp.arange(S, dtype=jnp.int32)[None, :], (B, S))
        poss = position_ids.reshape(M).astype(jnp.int32)
        if Mp != M:
            poss = jnp.concatenate([poss, jnp.zeros((Mp - M,), jnp.int32)])
        pos_arg = jnp.take(pos_emb, poss, axis=0)      # (Mp, H)
        pos_spec = pl.BlockSpec((tm, H), lambda i, ids, tts: (i, 0))

    # VMEM budget from actual shapes (resident tables + double-buffered pipelined blocks
    # + f32 scratch), with headroom, instead of a blanket limit.
    def nbytes(x):
        return int(x.size) * x.dtype.itemsize
    out_itemsize = jnp.dtype(word_emb.dtype).itemsize
    needed = 2 * (nbytes(word_emb) + nbytes(tt_emb) + nbytes(g2) + nbytes(b2))
    needed += 2 * tm * H * pos_emb.dtype.itemsize      # position blocks
    needed += 2 * tm * H * out_itemsize                 # output blocks
    needed += tm * H * 4                                 # f32 scratch
    vmem_limit = int(min(96 * 2**20, max(2 * needed + 4 * 2**20, 16 * 2**20)))

    kernel = functools.partial(bert_embeddings_kernel, tm=tm, eps=eps)

    out = pl.pallas_call(
        kernel,
        out_shape=jax.ShapeDtypeStruct((Mp, H), word_emb.dtype),
        grid_spec=pltpu.PrefetchScalarGridSpec(
            num_scalar_prefetch=2,                       # ids, token-type ids -> SMEM
            grid=(Mp // tm,),
            in_specs=[
                pos_spec,                                                    # position rows
                pl.BlockSpec((word_emb.shape[0], H), lambda i, ids, tts: (0, 0)),  # word tbl
                pl.BlockSpec((tt_emb.shape[0], H), lambda i, ids, tts: (0, 0)),    # tt tbl
                pl.BlockSpec((1, H), lambda i, ids, tts: (0, 0)),            # LN gamma
                pl.BlockSpec((1, H), lambda i, ids, tts: (0, 0)),            # LN beta
            ],
            out_specs=pl.BlockSpec((tm, H), lambda i, ids, tts: (i, 0)),
            scratch_shapes=[pltpu.VMEM((tm, H), jnp.float32)],
        ),
        compiler_params=pltpu.CompilerParams(
            dimension_semantics=("parallel",),
            vmem_limit_bytes=vmem_limit),
    )(ids, tts, pos_arg, word_emb, tt_emb, g2, b2)

    return out[:M].reshape(B, S, H)


if __name__ == "__main__":
    # Small BERT-like config (hidden kept lane-dense at 128).
    batch, seq = 2, 64
    hidden = 128
    vocab = 512
    max_pos = 128
    type_vocab = 2
    pad_token_id = 0
    eps = 1e-12

    key = jax.random.PRNGKey(0)
    kw, kp, kt, kg, kb, ki, ktt = jax.random.split(key, 7)

    word_emb = 0.02 * jax.random.normal(kw, (vocab, hidden), jnp.float32)
    word_emb = word_emb.at[pad_token_id].set(0.0)   # nn.Embedding padding_idx init
    pos_emb = 0.02 * jax.random.normal(kp, (max_pos, hidden), jnp.float32)
    tt_emb = 0.02 * jax.random.normal(kt, (type_vocab, hidden), jnp.float32)
    gamma = 1.0 + 0.1 * jax.random.normal(kg, (hidden,), jnp.float32)
    beta = 0.1 * jax.random.normal(kb, (hidden,), jnp.float32)

    input_ids = jax.random.randint(ki, (batch, seq), 0, vocab)
    token_type_ids = jax.random.randint(ktt, (batch, seq), 0, type_vocab)

    # tm=64 matches the toy seq length (fast contiguous-position path);
    # production shapes should use the default tm=256 (v6e/v7x) / 128-256 (v5e).
    out = bert_embeddings(input_ids, token_type_ids, None,
                          word_emb, pos_emb, tt_emb, gamma, beta,
                          eps=eps, tm=64)
    out = jax.block_until_ready(out)

    # Pure-JAX reference (eval-mode BertEmbeddings).
    position_ids = jnp.broadcast_to(jnp.arange(seq, dtype=jnp.int32)[None, :],
                                    (batch, seq))
    e = word_emb[input_ids] + pos_emb[position_ids] + tt_emb[token_type_ids]
    mean = e.mean(-1, keepdims=True)
    var = ((e - mean) ** 2).mean(-1, keepdims=True)
    ref = (e - mean) / jnp.sqrt(var + eps) * gamma + beta

    assert out.shape == (batch, seq, hidden)
    err = jnp.max(jnp.abs(out - ref))
    assert jnp.allclose(out, ref, atol=2e-4, rtol=2e-4), f"max err {err}"
    print("KERNEL_OK")
</pallas_src>

<mosaic_0001>
module attributes {stable_mosaic.version = 11 : i64} {
  func.func @bert_embeddings_kernel(%arg0: i32, %arg1: memref<128xi32, #tpu.memory_space<smem>>, %arg2: memref<128xi32, #tpu.memory_space<smem>>, %arg3: memref<64x128xf32, #tpu.memory_space<vmem>>, %arg4: memref<512x128xf32, #tpu.memory_space<vmem>>, %arg5: memref<2x128xf32, #tpu.memory_space<vmem>>, %arg6: memref<1x128xf32, #tpu.memory_space<vmem>>, %arg7: memref<1x128xf32, #tpu.memory_space<vmem>>, %arg8: memref<64x128xf32, #tpu.memory_space<vmem>>, %arg9: memref<64x128xf32, #tpu.memory_space<vmem>>) attributes {dimension_semantics = [#tpu.dimension_semantics<parallel>], iteration_bounds = array<i64: 2>, scalar_prefetch = 2 : i64, scratch_operands = 1 : i64, tpu.core_type = #tpu.core_type<tc>, window_params = [{transform_indices = @transform_0, window_bounds = array<i64: 64, 128>}, {pipeline_mode = #tpu.pipeline_mode<synchronous>, transform_indices = @transform_1, window_bounds = array<i64: 512, 128>}, {pipeline_mode = #tpu.pipeline_mode<synchronous>, transform_indices = @transform_2, window_bounds = array<i64: 2, 128>}, {pipeline_mode = #tpu.pipeline_mode<synchronous>, transform_indices = @transform_3, window_bounds = array<i64: 1, 128>}, {pipeline_mode = #tpu.pipeline_mode<synchronous>, transform_indices = @transform_4, window_bounds = array<i64: 1, 128>}, {transform_indices = @transform_5, window_bounds = array<i64: 64, 128>}]} {
    %c64_i32 = arith.constant 64 : i32
    %0 = arith.muli %arg0, %c64_i32 : i32
    %c0_i32 = arith.constant 0 : i32
    %c64_i32_0 = arith.constant 64 : i32
    %1 = arith.addi %c0_i32, %c64_i32_0 : i32
    %c1_i32 = arith.constant 1 : i32
    scf.for %arg10 = %c0_i32 to %1 step %c1_i32  : i32 {
      %30 = arith.addi %0, %arg10 : i32
      %31 = arith.index_cast %30 : i32 to index
      %32 = memref.load %arg1[%31] : memref<128xi32, #tpu.memory_space<smem>>
      %33 = arith.addi %0, %arg10 : i32
      %34 = arith.index_cast %33 : i32 to index
      %35 = memref.load %arg2[%34] : memref<128xi32, #tpu.memory_space<smem>>
      %36 = arith.index_cast %32 : i32 to index
      %c0_15 = arith.constant 0 : index
      %37 = vector.load %arg4[%36, %c0_15] : memref<512x128xf32, #tpu.memory_space<vmem>>, vector<1x128xf32>
      %38 = arith.index_cast %35 : i32 to index
      %c0_16 = arith.constant 0 : index
      %39 = vector.load %arg5[%38, %c0_16] : memref<2x128xf32, #tpu.memory_space<vmem>>, vector<1x128xf32>
      %40 = arith.addf %37, %39 : vector<1x128xf32>
      %41 = arith.index_cast %arg10 : i32 to index
      %c0_17 = arith.constant 0 : index
      %42 = vector.load %arg9[%41, %c0_17] : memref<64x128xf32, #tpu.memory_space<vmem>>, vector<1x128xf32>
      tpu.vector_store %arg9[%41, %c0_17], %40 {strides = array<i32>} : memref<64x128xf32, #tpu.memory_space<vmem>>, vector<1x128xf32>,
    }
    %c64_i32_1 = arith.constant 64 : i32
    %c0 = arith.constant 0 : index
    %c0_2 = arith.constant 0 : index
    %2 = vector.load %arg9[%c0, %c0_2] : memref<64x128xf32, #tpu.memory_space<vmem>>, vector<64x128xf32>
    %c0_3 = arith.constant 0 : index
    %c0_4 = arith.constant 0 : index
    %3 = vector.load %arg3[%c0_3, %c0_4] : memref<64x128xf32, #tpu.memory_space<vmem>>, vector<64x128xf32>
    %4 = arith.addf %2, %3 : vector<64x128xf32>
    %cst = arith.constant dense<0.000000e+00> : vector<64xf32>
    %5 = vector.multi_reduction <add>, %4, %cst [1] : vector<64x128xf32> to vector<64xf32>
    %6 = vector.shape_cast %5 : vector<64xf32> to vector<64x1xf32>
    %7 = arith.mulf %4, %4 : vector<64x128xf32>
    %cst_5 = arith.constant dense<0.000000e+00> : vector<64xf32>
    %8 = vector.multi_reduction <add>, %7, %cst_5 [1] : vector<64x128xf32> to vector<64xf32>
    %9 = vector.shape_cast %8 : vector<64xf32> to vector<64x1xf32>
    %cst_6 = arith.constant 7.812500e-03 : f32
    %10 = vector.broadcast %cst_6 : f32 to vector<64x1xf32>
    %11 = arith.mulf %6, %10 : vector<64x1xf32>
    %cst_7 = arith.constant 7.812500e-03 : f32
    %12 = vector.broadcast %cst_7 : f32 to vector<64x1xf32>
    %13 = arith.mulf %9, %12 : vector<64x1xf32>
    %14 = arith.mulf %11, %11 : vector<64x1xf32>
    %15 = arith.subf %13, %14 : vector<64x1xf32>
    %cst_8 = arith.constant 9.99999996E-13 : f32
    %16 = vector.broadcast %cst_8 : f32 to vector<64x1xf32>
    %17 = arith.addf %15, %16 : vector<64x1xf32>
    %18 = math.rsqrt %17 : vector<64x1xf32>
    %19 = vector.broadcast %11 : vector<64x1xf32> to vector<64x128xf32>
    %20 = arith.subf %4, %19 : vector<64x128xf32>
    %21 = vector.broadcast %18 : vector<64x1xf32> to vector<64x128xf32>
    %22 = arith.mulf %20, %21 : vector<64x128xf32>
    %c0_9 = arith.constant 0 : index
    %c0_10 = arith.constant 0 : index
    %23 = vector.load %arg6[%c0_9, %c0_10] : memref<1x128xf32, #tpu.memory_space<vmem>>, vector<1x128xf32>
    %24 = vector.broadcast %23 : vector<1x128xf32> to vector<64x128xf32>
    %25 = arith.mulf %22, %24 : vector<64x128xf32>
    %c0_11 = arith.constant 0 : index
    %c0_12 = arith.constant 0 : index
    %26 = vector.load %arg7[%c0_11, %c0_12] : memref<1x128xf32, #tpu.memory_space<vmem>>, vector<1x128xf32>
    %27 = vector.broadcast %26 : vector<1x128xf32> to vector<64x128xf32>
    %28 = arith.addf %25, %27 : vector<64x128xf32>
    %c0_13 = arith.constant 0 : index
    %c0_14 = arith.constant 0 : index
    %29 = vector.load %arg8[%c0_13, %c0_14] : memref<64x128xf32, #tpu.memory_space<vmem>>, vector<64x128xf32>
    tpu.vector_store %arg8[%c0_13, %c0_14], %28 {strides = array<i32>} : memref<64x128xf32, #tpu.memory_space<vmem>>, vector<64x128xf32>,
    return
  }
  func.func @transform_0(%arg0: i32, %arg1: memref<128xi32, #tpu.memory_space<smem>>, %arg2: memref<128xi32, #tpu.memory_space<smem>>) -> (i32, i32) {
    %c1_i32 = arith.constant 1 : i32
    %c0_i32 = arith.constant 0 : i32
    %0 = arith.cmpi eq, %c1_i32, %c0_i32 : i32
    %c1_i32_0 = arith.constant 1 : i32
    %1 = arith.select %0, %c1_i32_0, %c1_i32 : i32
    %2 = arith.remsi %arg0, %1 : i32
    %c0_i32_1 = arith.constant 0 : i32
    %3 = arith.cmpi ne, %2, %c0_i32_1 : i32
    %c0_i32_2 = arith.constant 0 : i32
    %4 = arith.cmpi slt, %2, %c0_i32_2 : i32
    %c0_i32_3 = arith.constant 0 : i32
    %5 = arith.cmpi slt, %1, %c0_i32_3 : i32
    %6 = arith.xori %4, %5 : i1
    %7 = arith.andi %6, %3 : i1
    %8 = arith.addi %2, %1 : i32
    %9 = arith.select %7, %8, %2 : i32
    %c0_i32_4 = arith.constant 0 : i32
    %c0_i32_5 = arith.constant 0 : i32
    return %9, %c0_i32_4 : i32, i32
  }
  func.func @transform_1(%arg0: i32, %arg1: memref<128xi32, #tpu.memory_space<smem>>, %arg2: memref<128xi32, #tpu.memory_space<smem>>) -> (i32, i32) {
    %c0_i32 = arith.constant 0 : i32
    %c0_i32_0 = arith.constant 0 : i32
    %c0_i32_1 = arith.constant 0 : i32
    return %c0_i32, %c0_i32_0 : i32, i32
  }
  func.func @transform_2(%arg0: i32, %arg1: memref<128xi32, #tpu.memory_space<smem>>, %arg2: memref<128xi32, #tpu.memory_space<smem>>) -> (i32, i32) {
    %c0_i32 = arith.constant 0 : i32
    %c0_i32_0 = arith.constant 0 : i32
    %c0_i32_1 = arith.constant 0 : i32
    return %c0_i32, %c0_i32_0 : i32, i32
  }
  func.func @transform_3(%arg0: i32, %arg1: memref<128xi32, #tpu.memory_space<smem>>, %arg2: memref<128xi32, #tpu.memory_space<smem>>) -> (i32, i32) {
    %c0_i32 = arith.constant 0 : i32
    %c0_i32_0 = arith.constant 0 : i32
    %c0_i32_1 = arith.constant 0 : i32
    return %c0_i32, %c0_i32_0 : i32, i32
  }
  func.func @transform_4(%arg0: i32, %arg1: memref<128xi32, #tpu.memory_space<smem>>, %arg2: memref<128xi32, #tpu.memory_space<smem>>) -> (i32, i32) {
    %c0_i32 = arith.constant 0 : i32
    %c0_i32_0 = arith.constant 0 : i32
    %c0_i32_1 = arith.constant 0 : i32
    return %c0_i32, %c0_i32_0 : i32, i32
  }
  func.func @transform_5(%arg0: i32, %arg1: memref<128xi32, #tpu.memory_space<smem>>, %arg2: memref<128xi32, #tpu.memory_space<smem>>) -> (i32, i32) {
    %c0_i32 = arith.constant 0 : i32
    %c0_i32_0 = arith.constant 0 : i32
    return %arg0, %c0_i32 : i32, i32
  }
}

</mosaic_0001>

<llo_original>
// kernel: tpu_custom_call.1
$region0: #{tpu_custom_call.1}
  #allocation0 [shape = 'u32[]', space=smem, size = 0x4, offset = 0x4, fixed_abs, tag = 'smem constant byte address 0x4 - core index']
  #allocation1 [shape = 'u32[72,128]{1,0:T(1,128)}', space=vmem, size = 0x9000, scoped, tag = 'internal scratch']
  #allocation2 [shape = 'f32[64,128]{1,0:T(8,128)}', space=vmem, size = 0x8000, scoped, tag = 'scratch operand']
  #allocation3 [shape = 's32[1]{0}', space=sflag, size = 0x4, scoped, tag = 'scoped memory for tpu_custom_call.1']
  #allocation4 [shape = 'u8[512]{0}', space=smem, size = 0x200, scoped, tag = 'prefetched SMEM operand 0']
  #allocation5 [shape = 'u8[512]{0}', space=smem, size = 0x200, scoped, tag = 'prefetched SMEM operand 1']
  %s0 = inlined_call_operand.hbm [shape: s32[128], index: 0, kind: input, shape index: {}]
  %s1 = inlined_call_operand.hbm [shape: s32[128], index: 1, kind: input, shape index: {}]
  %s2 = inlined_call_operand.hbm [shape: f32[128,128], index: 2, kind: input, shape index: {}]
  %s3 = inlined_call_operand.hbm [shape: f32[512,128], index: 3, kind: input, shape index: {}]
  %s4 = inlined_call_operand.vmem [shape: f32[2,128], index: 4, kind: input, shape index: {}]
  %s5 = inlined_call_operand.vmem [shape: f32[1,128], index: 5, kind: input, shape index: {}]
  %s6 = inlined_call_operand.vmem [shape: f32[1,128], index: 6, kind: input, shape index: {}]
  %s7 = inlined_call_operand.hbm [shape: f32[128,128], index: 7, kind: output, shape index: {}]
  %s8 = sld [smem:[#allocation0]]
  $region68: #{tpu_custom_call.1} parent=0
    _
  %s10 = ssub.s32 1, %s8
  %s11 = scalar_select 0, %s10, %s8
  %s13 = sshll.u32 %s0, 4
  %s14 = int_to_ptr.hbm [resolvable:$true] %s13
  %16 = dma.hbm_to_smem %s14, 16, [#allocation4], [#allocation3]
  %s18 = sshll.u32 %s1, 4
  %s19 = int_to_ptr.hbm [resolvable:$true] %s18
  %21 = dma.hbm_to_smem %s19, 16, [#allocation5], [#allocation3]
  %23 = dma.done [#allocation3], 32
  %24 = sfence
  $region1: #{tpu_custom_call.1} parent=0
    #allocation6 [shape = 'u8[32768]{0}', space=vmem, size = 0x8000, scoped, tag = 'input window, operand 2, single buffered']
    #allocation7 [shape = 's32[2]{0}', space=sflag, size = 0x8, scoped, tag = 'scoped memory for tpu_custom_call.1']
    #allocation8 [shape = 's32[2]{0}', space=sflag, size = 0x8, scoped, tag = 'scoped memory for tpu_custom_call.1']
    #allocation9 [shape = 'u8[262144]{0}', space=vmem, size = 0x40000, scoped, tag = 'input window, operand 3, single buffered']
    #allocation10 [shape = 's32[1]{0}', space=sflag, size = 0x4, scoped, tag = 'scoped memory for tpu_custom_call.1']
    #allocation11 [shape = 'u8[65536]{0}', space=vmem, size = 0x10000, scoped, tag = 'output window, operand 0']
    %25 = vsyncpa [#allocation7], 0
    %26 = vsyncpa [#allocation10], 0
    %27 = vsyncpa [#allocation8], 0
    %s28 = scalar_lea.sflag [#allocation8], 1
    %29 = vsyncpa %s28, 0
    loop: start=0, step=1, limit=4
    $region2: #{tpu_custom_call.1} parent=1 // loop_pre_header
      _
    $region3: #{tpu_custom_call.1} parent=1 // loop_header
      %s31 = sphi 0, %s35
      %p32 = scmp.ge.s32.totalorder %s31, 4
      %s39 = sphi 0, %s39
      %s41 = sphi 0, %s39
      %s42 = sphi 0, %s41
      %s56 = sphi 0, %s42
      %s60 = sphi 0, %s60
      %s62 = sphi 0, %s60
      %s63 = sphi 0, %s62
      %s77 = sphi 0, %s63
      %s81 = sphi 0, %s81
      %s83 = sphi 0, %s81
      %s84 = sphi 0, %s83
      %s98 = sphi 0, %s84
      %s102 = sphi 0, %s102
      %s104 = sphi 0, %s102
      %s105 = sphi 0, %s104
      %s119 = sphi 0, %s105
      %s123 = sphi 0, %s123
      %s125 = sphi 0, %s123
      %s126 = sphi 0, %s125
      %s140 = sphi 0, %s126
      %s146 = sphi 0, %s148
      %s149 = sphi 0, %s146
      %s150 = sphi 0, %s149
      %s166 = sphi 0, %s150
    $region4: #{tpu_custom_call.1} parent=1 // loop_header_branch
      %34 = sbr.rel (%p32) target = $region8
    $region5: #{tpu_custom_call.1} parent=1 // loop_body
      %s36 = ssub.s32 %s31, 1
      %s37 = ssub.s32 %s31, 2
      %s38 = sadd.s32 %s31, 1
      %s40 = sadd.s32 %s39, 1
      %p43 = scmp.eq.s32.totalorder %s31, 1
      %p44 = scmp.ne.s32.totalorder %s39, %s41
      %p45 = scmp.eq.s32.totalorder %s31, 0
      %p46 = por %p44, %p45
      %p47 = scmp.ne.s32.totalorder %s39, %s41
      %p48 = scmp.eq.s32.totalorder %s36, 1
      %p49 = por %p47, %p48
      %p50 = scmp.ne.s32.totalorder %s41, %s42
      %p51 = scmp.eq.s32.totalorder %s36, 0
      %p52 = por %p50, %p51
      %p53 = scmp.ne.s32.totalorder %s41, %s42
      %p54 = scmp.eq.s32.totalorder %s37, 1
      %p55 = por %p53, %p54
      %p57 = scmp.ne.s32.totalorder %s42, %s56
      %p58 = scmp.eq.s32.totalorder %s37, 0
      %p59 = por %p57, %p58
      %s61 = sadd.s32 %s60, 1
      %p64 = scmp.eq.s32.totalorder %s31, 1
      %p65 = scmp.ne.s32.totalorder %s60, %s62
      %p66 = scmp.eq.s32.totalorder %s31, 0
      %p67 = por %p65, %p66
      %p68 = scmp.ne.s32.totalorder %s60, %s62
      %p69 = scmp.eq.s32.totalorder %s36, 1
      %p70 = por %p68, %p69
      %p71 = scmp.ne.s32.totalorder %s62, %s63
      %p72 = scmp.eq.s32.totalorder %s36, 0
      %p73 = por %p71, %p72
      %p74 = scmp.ne.s32.totalorder %s62, %s63
      %p75 = scmp.eq.s32.totalorder %s37, 1
      %p76 = por %p74, %p75
      %p78 = scmp.ne.s32.totalorder %s63, %s77
      %p79 = scmp.eq.s32.totalorder %s37, 0
      %p80 = por %p78, %p79
      %s82 = sadd.s32 %s81, 1
      %p85 = scmp.eq.s32.totalorder %s31, 1
      %p86 = scmp.ne.s32.totalorder %s81, %s83
      %p87 = scmp.eq.s32.totalorder %s31, 0
      %p88 = por %p86, %p87
      %p89 = scmp.ne.s32.totalorder %s81, %s83
      %p90 = scmp.eq.s32.totalorder %s36, 1
      %p91 = por %p89, %p90
      %p92 = scmp.ne.s32.totalorder %s83, %s84
      %p93 = scmp.eq.s32.totalorder %s36, 0
      %p94 = por %p92, %p93
      %p95 = scmp.ne.s32.totalorder %s83, %s84
      %p96 = scmp.eq.s32.totalorder %s37, 1
      %p97 = por %p95, %p96
      %p99 = scmp.ne.s32.totalorder %s84, %s98
      %p100 = scmp.eq.s32.totalorder %s37, 0
      %p101 = por %p99, %p100
      %s103 = sadd.s32 %s102, 1
      %p106 = scmp.eq.s32.totalorder %s31, 1
      %p107 = scmp.ne.s32.totalorder %s102, %s104
      %p108 = scmp.eq.s32.totalorder %s31, 0
      %p109 = por %p107, %p108
      %p110 = scmp.ne.s32.totalorder %s102, %s104
      %p111 = scmp.eq.s32.totalorder %s36, 1
      %p112 = por %p110, %p111
      %p113 = scmp.ne.s32.totalorder %s104, %s105
      %p114 = scmp.eq.s32.totalorder %s36, 0
      %p115 = por %p113, %p114
      %p116 = scmp.ne.s32.totalorder %s104, %s105
      %p117 = scmp.eq.s32.totalorder %s37, 1
      %p118 = por %p116, %p117
      %p120 = scmp.ne.s32.totalorder %s105, %s119
      %p121 = scmp.eq.s32.totalorder %s37, 0
      %p122 = por %p120, %p121
      %s124 = sadd.s32 %s123, 1
      %p127 = scmp.eq.s32.totalorder %s31, 1
      %p128 = scmp.ne.s32.totalorder %s123, %s125
      %p129 = scmp.eq.s32.totalorder %s31, 0
      %p130 = por %p128, %p129
      %p131 = scmp.ne.s32.totalorder %s123, %s125
      %p132 = scmp.eq.s32.totalorder %s36, 1
      %p133 = por %p131, %p132
      %p134 = scmp.ne.s32.totalorder %s125, %s126
      %p135 = scmp.eq.s32.totalorder %s36, 0
      %p136 = por %p134, %p135
      %p137 = scmp.ne.s32.totalorder %s125, %s126
      %p138 = scmp.eq.s32.totalorder %s37, 1
      %p139 = por %p137, %p138
      %p141 = scmp.ne.s32.totalorder %s126, %s140
      %p142 = scmp.eq.s32.totalorder %s37, 0
      %p143 = por %p141, %p142
      %s144 = ssub.s32 %s31, %s38
      %p145 = scmp.eq.s32.totalorder %s144, 0
      %s147 = sadd.s32 %s146, 1
      %s148 = scalar_select %p145, %s146, %s147
      %p151 = pneg %p145
      %p152 = scmp.eq.s32.totalorder %s31, 1
      %p153 = por %p151, %p152
      %p154 = scmp.ne.s32.totalorder %s146, %s149
      %p155 = scmp.eq.s32.totalorder %s31, 0
      %p156 = por %p154, %p155
      %p157 = scmp.ne.s32.totalorder %s146, %s149
      %p158 = scmp.eq.s32.totalorder %s36, 1
      %p159 = por %p157, %p158
      %p160 = scmp.ne.s32.totalorder %s149, %s150
      %p161 = scmp.eq.s32.totalorder %s36, 0
      %p162 = por %p160, %p161
      %p163 = scmp.ne.s32.totalorder %s149, %s150
      %p164 = scmp.eq.s32.totalorder %s37, 1
      %p165 = por %p163, %p164
      %p167 = scmp.ne.s32.totalorder %s150, %s166
      %p168 = scmp.eq.s32.totalorder %s37, 0
      %p169 = por %p167, %p168
      %p170 = scmp.le.s32.totalorder 1, %s31
      %p171 = scmp.lt.s32.totalorder %s31, 3
      %p172 = pnand %p170, %p171
      %p173 = pneg %p172
      // Predicated region
      $region9: #{tpu_custom_call.1} parent=5 // pred_check
        _
      $region10: #{tpu_custom_call.1} parent=5 // pred_check_branch
        %175 = sbr.rel (%p172) target = $region12
      $region11: #{tpu_custom_call.1} parent=5 // pred_region
        %s176 = ssub.s32 %s31, 1
        // Predicated region
        $region13: #{tpu_custom_call.1} parent=11 // pred_check
          %p177 = pneg %p52
        $region14: #{tpu_custom_call.1} parent=11 // pred_check_branch
          %179 = sbr.rel (%p177) target = $region16
        $region15: #{tpu_custom_call.1} parent=11 // pred_region
          %181 = vsyncadd [#allocation7], 0
          %s182 = sshll.u32 %s2, 4
          %s183 = int_to_ptr.hbm [resolvable:$true] %s182
          %s184 = sshll.u32 [#allocation6], 4
          %s185 = int_to_ptr.vmem [resolvable:$true] %s184
          %190 = dma.hbm_to_vmem [thread:$0]  %s183, 1024, %s185, [#allocation7], 128, 128, 8
        $region16: #{tpu_custom_call.1} parent=11 // pred_fallthru
          _
        // Predicated region
        $region17: #{tpu_custom_call.1} parent=11 // pred_check
          %p191 = pneg %p73
        $region18: #{tpu_custom_call.1} parent=11 // pred_check_branch
          %193 = sbr.rel (%p191) target = $region20
        $region19: #{tpu_custom_call.1} parent=11 // pred_region
          %195 = vsyncadd [#allocation10], 0
          %s196 = sshll.u32 %s3, 4
          %s197 = int_to_ptr.hbm [resolvable:$true] %s196
          %s198 = sshll.u32 [#allocation9], 4
          %s199 = int_to_ptr.vmem [resolvable:$true] %s198
          %204 = dma.hbm_to_vmem [thread:$0]  %s197, 8192, %s199, [#allocation10], 128, 128, 8
        $region20: #{tpu_custom_call.1} parent=11 // pred_fallthru
          _
        // Predicated region
        $region21: #{tpu_custom_call.1} parent=11 // pred_check
          %p205 = pneg %p94
        $region22: #{tpu_custom_call.1} parent=11 // pred_check_branch
          %207 = sbr.rel (%p205) target = $region24
        $region23: #{tpu_custom_call.1} parent=11 // pred_region
          _
        $region24: #{tpu_custom_call.1} parent=11 // pred_fallthru
          _
        // Predicated region
        $region25: #{tpu_custom_call.1} parent=11 // pred_check
          %p208 = pneg %p115
        $region26: #{tpu_custom_call.1} parent=11 // pred_check_branch
          %210 = sbr.rel (%p208) target = $region28
        $region27: #{tpu_custom_call.1} parent=11 // pred_region
          _
        $region28: #{tpu_custom_call.1} parent=11 // pred_fallthru
          _
        // Predicated region
        $region29: #{tpu_custom_call.1} parent=11 // pred_check
          %p211 = pneg %p136
        $region30: #{tpu_custom_call.1} parent=11 // pred_check_branch
          %213 = sbr.rel (%p211) target = $region32
        $region31: #{tpu_custom_call.1} parent=11 // pred_region
          _
        $region32: #{tpu_custom_call.1} parent=11 // pred_fallthru
          _
      $region12: #{tpu_custom_call.1} parent=5 // pred_fallthru
        _
      %p214 = scmp.lt.s32.totalorder %s31, 2
      // Predicated region
      $region33: #{tpu_custom_call.1} parent=5 // pred_check
        %p215 = pneg %p214
      $region34: #{tpu_custom_call.1} parent=5 // pred_check_branch
        %217 = sbr.rel (%p215) target = $region36
      $region35: #{tpu_custom_call.1} parent=5 // pred_region
        _
      $region36: #{tpu_custom_call.1} parent=5 // pred_fallthru
        _
      %p218 = scmp.le.s32.totalorder 1, %s31
      %p219 = scmp.lt.s32.totalorder %s31, 3
      %p220 = pnand %p218, %p219
      %p221 = pneg %p220
      // Predicated region
      $region37: #{tpu_custom_call.1} parent=5 // pred_check
        _
      $region38: #{tpu_custom_call.1} parent=5 // pred_check_branch
        %223 = sbr.rel (%p220) target = $region40
      $region39: #{tpu_custom_call.1} parent=5 // pred_region
        %s224 = ssub.s32 %s31, 1
        // Predicated region
        $region41: #{tpu_custom_call.1} parent=39 // pred_check
          %p225 = pneg %p52
        $region42: #{tpu_custom_call.1} parent=39 // pred_check_branch
          %227 = sbr.rel (%p225) target = $region44
        $region43: #{tpu_custom_call.1} parent=39 // pred_region
          %229 = dma.done [#allocation7], 1024
        $region44: #{tpu_custom_call.1} parent=39 // pred_fallthru
          _
        // Predicated region
        $region45: #{tpu_custom_call.1} parent=39 // pred_check
          %p230 = pneg %p73
        $region46: #{tpu_custom_call.1} parent=39 // pred_check_branch
          %232 = sbr.rel (%p230) target = $region48
        $region47: #{tpu_custom_call.1} parent=39 // pred_region
          %234 = dma.done [#allocation10], 8192
        $region48: #{tpu_custom_call.1} parent=39 // pred_fallthru
          _
        %p235 = pneg %p52
        %p236 = pneg %p49
        %p237 = pneg %p73
        %p238 = pneg %p70
        %p239 = pneg %p94
        %p240 = pneg %p91
        %p241 = pneg %p115
        %p242 = pneg %p112
        %p243 = pneg %p136
        %p244 = pneg %p133
        %p245 = pneg %p162
        %p246 = pneg %p159
        %s247 = sand.u32 %s149, 1
        %s248 = scalar_lea.sflag [#allocation8], %s247
        %s249 = sand.u32 %s149, 1
        %s250 = smul.addr %s249, 64
        %s251 = scalar_lea.vmem [#allocation11], %s250
        %s252 = smul.u32 8, %s36
        %s253 = smul.u32 %s36, 64
        loop: start=0, step=1, limit=64
        $region49: #{tpu_custom_call.1} parent=39 // loop_pre_header
          _
        $region50: #{tpu_custom_call.1} parent=39 // loop_header
          %s255 = sphi 0, %s259
          %p256 = scmp.ge.s32.totalorder %s255, 64
        $region51: #{tpu_custom_call.1} parent=39 // loop_header_branch
          %258 = sbr.rel (%p256) target = $region55
        $region52: #{tpu_custom_call.1} parent=39 // loop_body
          %s260 = sadd.s32 %s253, %s255
          %s261 = sld [smem:[#allocation4 + %s260]]
          %s262 = sld [smem:[#allocation5 + %s260]]
          %s263 = scalar_lea.vmem [#allocation9], %s261
          %v264 = vld [vmem:[%s263] sm:$0x1]
          %s265 = scalar_lea.vmem %s4, %s262
          %v266 = vld [vmem:[%s265] sm:$0x1]
          %v267 = vadd.f32 %v264, %v266
          %s268 = scalar_lea.vmem [#allocation2], %s255
          %269 = vst [vmem:[%s268] sm:$0x1] %v267
        $region53: #{tpu_custom_call.1} parent=39 // loop_footer
          %s259 = sadd.s32 1, %s255
        $region54: #{tpu_custom_call.1} parent=39 // loop_footer_branch
          %254 = sbr.rel target = $region50
        $region55: #{tpu_custom_call.1} parent=39 // loop_exit
          _
        %v270 = vld [vmem:[#allocation2] sm:$0xff]
        %v271 = vld [vmem:[#allocation2 + $0x8] sm:$0xff]
        %v272 = vld [vmem:[#allocation2 + $0x10] sm:$0xff]
        %v273 = vld [vmem:[#allocation2 + $0x18] sm:$0xff]
        %v274 = vld [vmem:[#allocation2 + $0x20] sm:$0xff]
        %v275 = vld [vmem:[#allocation2 + $0x28] sm:$0xff]
        %v276 = vld [vmem:[#allocation2 + $0x30] sm:$0xff]
        %v277 = vld [vmem:[#allocation2 + $0x38] sm:$0xff]
        %v278 = vld [vmem:[#allocation6] sm:$0xff]
        %v279 = vld [vmem:[#allocation6 + $0x8] sm:$0xff]
        %v280 = vld [vmem:[#allocation6 + $0x10] sm:$0xff]
        %v281 = vld [vmem:[#allocation6 + $0x18] sm:$0xff]
        %v282 = vld [vmem:[#allocation6 + $0x20] sm:$0xff]
        %v283 = vld [vmem:[#allocation6 + $0x28] sm:$0xff]
        %v284 = vld [vmem:[#allocation6 + $0x30] sm:$0xff]
        %v285 = vld [vmem:[#allocation6 + $0x38] sm:$0xff]
        %v286 = vadd.f32 %v270, %v278
        %v287 = vadd.f32 %v271, %v279
        %v288 = vadd.f32 %v272, %v280
        %v289 = vadd.f32 %v273, %v281
        %v290 = vadd.f32 %v274, %v282
        %v291 = vadd.f32 %v275, %v283
        %v292 = vadd.f32 %v276, %v284
        %v293 = vadd.f32 %v277, %v285
        %294 = vadd.xlane.f32.xlu0 %v286
        %v295 = vpop.xlane.xlu0 %294
        %296 = vadd.xlane.f32.xlu0 %v287
        %v297 = vpop.xlane.xlu0 %296
        %298 = vadd.xlane.f32.xlu0 %v288
        %v299 = vpop.xlane.xlu0 %298
        %300 = vadd.xlane.f32.xlu0 %v289
        %v301 = vpop.xlane.xlu0 %300
        %302 = vadd.xlane.f32.xlu0 %v290
        %v303 = vpop.xlane.xlu0 %302
        %304 = vadd.xlane.f32.xlu0 %v291
        %v305 = vpop.xlane.xlu0 %304
        %306 = vadd.xlane.f32.xlu0 %v292
        %v307 = vpop.xlane.xlu0 %306
        %308 = vadd.xlane.f32.xlu0 %v293
        %v309 = vpop.xlane.xlu0 %308
        %v310 = vmul.f32 %v286, %v286
        %v311 = vmul.f32 %v287, %v287
        %v312 = vmul.f32 %v288, %v288
        %v313 = vmul.f32 %v289, %v289
        %v314 = vmul.f32 %v290, %v290
        %v315 = vmul.f32 %v291, %v291
        %v316 = vmul.f32 %v292, %v292
        %v317 = vmul.f32 %v293, %v293
        %318 = vadd.xlane.f32.xlu0 %v310
        %v319 = vpop.xlane.xlu0 %318
        %320 = vadd.xlane.f32.xlu0 %v311
        %v321 = vpop.xlane.xlu0 %320
        %322 = vadd.xlane.f32.xlu0 %v312
        %v323 = vpop.xlane.xlu0 %322
        %324 = vadd.xlane.f32.xlu0 %v313
        %v325 = vpop.xlane.xlu0 %324
        %326 = vadd.xlane.f32.xlu0 %v314
        %v327 = vpop.xlane.xlu0 %326
        %328 = vadd.xlane.f32.xlu0 %v315
        %v329 = vpop.xlane.xlu0 %328
        %330 = vadd.xlane.f32.xlu0 %v316
        %v331 = vpop.xlane.xlu0 %330
        %332 = vadd.xlane.f32.xlu0 %v317
        %v333 = vpop.xlane.xlu0 %332
        %v334 = vmul.f32 %v295, 0.0078125
        %v335 = vmul.f32 %v297, 0.0078125
        %v336 = vmul.f32 %v299, 0.0078125
        %v337 = vmul.f32 %v301, 0.0078125
        %v338 = vmul.f32 %v303, 0.0078125
        %v339 = vmul.f32 %v305, 0.0078125
        %v340 = vmul.f32 %v307, 0.0078125
        %v341 = vmul.f32 %v309, 0.0078125
        %v342 = vmul.f32 %v319, 0.0078125
        %v343 = vmul.f32 %v321, 0.0078125
        %v344 = vmul.f32 %v323, 0.0078125
        %v345 = vmul.f32 %v325, 0.0078125
        %v346 = vmul.f32 %v327, 0.0078125
        %v347 = vmul.f32 %v329, 0.0078125
        %v348 = vmul.f32 %v331, 0.0078125
        %v349 = vmul.f32 %v333, 0.0078125
        %v350 = vmul.f32 %v334, %v334
        %v351 = vmul.f32 %v335, %v335
        %v352 = vmul.f32 %v336, %v336
        %v353 = vmul.f32 %v337, %v337
        %v354 = vmul.f32 %v338, %v338
        %v355 = vmul.f32 %v339, %v339
        %v356 = vmul.f32 %v340, %v340
        %v357 = vmul.f32 %v341, %v341
        %v358 = vsub.f32 %v342, %v350
        %v359 = vsub.f32 %v343, %v351
        %v360 = vsub.f32 %v344, %v352
        %v361 = vsub.f32 %v345, %v353
        %v362 = vsub.f32 %v346, %v354
        %v363 = vsub.f32 %v347, %v355
        %v364 = vsub.f32 %v348, %v356
        %v365 = vsub.f32 %v349, %v357
        %v366 = vadd.f32 %v358, 1e-12
        %v367 = vadd.f32 %v359, 1e-12
        %v368 = vadd.f32 %v360, 1e-12
        %v369 = vadd.f32 %v361, 1e-12
        %v370 = vadd.f32 %v362, 1e-12
        %v371 = vadd.f32 %v363, 1e-12
        %v372 = vadd.f32 %v364, 1e-12
        %v373 = vadd.f32 %v365, 1e-12
        %v374 = vrsqrt.pop %v366
        %v375 = vmul.f32 %v374, %v366
        %v376 = vmul.f32 %v375, %v374
        %v377 = vmul.f32 0.5, %v376
        %v378 = vsub.f32 1.5, %v377
        %v379 = vmul.f32 %v374, %v378
        %vm380 = vweird.f32 %v366
        %vm381 = vweird.f32 %v374
        %vm382 = vmor %vm380, %vm381
        %v383 = vsel %vm382, %v374, %v379
        %v384 = vrsqrt.pop %v367
        %v385 = vmul.f32 %v384, %v367
        %v386 = vmul.f32 %v385, %v384
        %v387 = vmul.f32 0.5, %v386
        %v388 = vsub.f32 1.5, %v387
        %v389 = vmul.f32 %v384, %v388
        %vm390 = vweird.f32 %v367
        %vm391 = vweird.f32 %v384
        %vm392 = vmor %vm390, %vm391
        %v393 = vsel %vm392, %v384, %v389
        %v394 = vrsqrt.pop %v368
        %v395 = vmul.f32 %v394, %v368
        %v396 = vmul.f32 %v395, %v394
        %v397 = vmul.f32 0.5, %v396
        %v398 = vsub.f32 1.5, %v397
        %v399 = vmul.f32 %v394, %v398
        %vm400 = vweird.f32 %v368
        %vm401 = vweird.f32 %v394
        %vm402 = vmor %vm400, %vm401
        %v403 = vsel %vm402, %v394, %v399
        %v404 = vrsqrt.pop %v369
        %v405 = vmul.f32 %v404, %v369
        %v406 = vmul.f32 %v405, %v404
        %v407 = vmul.f32 0.5, %v406
        %v408 = vsub.f32 1.5, %v407
        %v409 = vmul.f32 %v404, %v408
        %vm410 = vweird.f32 %v369
        %vm411 = vweird.f32 %v404
        %vm412 = vmor %vm410, %vm411
        %v413 = vsel %vm412, %v404, %v409
        %v414 = vrsqrt.pop %v370
        %v415 = vmul.f32 %v414, %v370
        %v416 = vmul.f32 %v415, %v414
        %v417 = vmul.f32 0.5, %v416
        %v418 = vsub.f32 1.5, %v417
        %v419 = vmul.f32 %v414, %v418
        %vm420 = vweird.f32 %v370
        %vm421 = vweird.f32 %v414
        %vm422 = vmor %vm420, %vm421
        %v423 = vsel %vm422, %v414, %v419
        %v424 = vrsqrt.pop %v371
        %v425 = vmul.f32 %v424, %v371
        %v426 = vmul.f32 %v425, %v424
        %v427 = vmul.f32 0.5, %v426
        %v428 = vsub.f32 1.5, %v427
        %v429 = vmul.f32 %v424, %v428
        %vm430 = vweird.f32 %v371
        %vm431 = vweird.f32 %v424
        %vm432 = vmor %vm430, %vm431
        %v433 = vsel %vm432, %v424, %v429
        %v434 = vrsqrt.pop %v372
        %v435 = vmul.f32 %v434, %v372
        %v436 = vmul.f32 %v435, %v434
        %v437 = vmul.f32 0.5, %v436
        %v438 = vsub.f32 1.5, %v437
        %v439 = vmul.f32 %v434, %v438
        %vm440 = vweird.f32 %v372
        %vm441 = vweird.f32 %v434
        %vm442 = vmor %vm440, %vm441
        %v443 = vsel %vm442, %v434, %v439
        %v444 = vrsqrt.pop %v373
        %v445 = vmul.f32 %v444, %v373
        %v446 = vmul.f32 %v445, %v444
        %v447 = vmul.f32 0.5, %v446
        %v448 = vsub.f32 1.5, %v447
        %v449 = vmul.f32 %v444, %v448
        %vm450 = vweird.f32 %v373
        %vm451 = vweird.f32 %v444
        %vm452 = vmor %vm450, %vm451
        %v453 = vsel %vm452, %v444, %v449
        %v454 = vsub.f32 %v286, %v334
        %v455 = vsub.f32 %v287, %v335
        %v456 = vsub.f32 %v288, %v336
        %v457 = vsub.f32 %v289, %v337
        %v458 = vsub.f32 %v290, %v338
        %v459 = vsub.f32 %v291, %v339
        %v460 = vsub.f32 %v292, %v340
        %v461 = vsub.f32 %v293, %v341
        %v462 = vmul.f32 %v454, %v383
        %v463 = vmul.f32 %v455, %v393
        %v464 = vmul.f32 %v456, %v403
        %v465 = vmul.f32 %v457, %v413
        %v466 = vmul.f32 %v458, %v423
        %v467 = vmul.f32 %v459, %v433
        %v468 = vmul.f32 %v460, %v443
        %v469 = vmul.f32 %v461, %v453
        %v470 = vld [vmem:[%s5] sm:$0x1]
        %v472 = vperm.slane %v470, 0
        %v474 = vmul.f32 %v462, %v472
        %v475 = vmul.f32 %v463, %v472
        %v476 = vmul.f32 %v464, %v472
        %v477 = vmul.f32 %v465, %v472
        %v478 = vmul.f32 %v466, %v472
        %v479 = vmul.f32 %v467, %v472
        %v480 = vmul.f32 %v468, %v472
        %v481 = vmul.f32 %v469, %v472
        %v482 = vld [vmem:[%s6] sm:$0x1]
        %v484 = vperm.slane %v482, 0
        %v486 = vadd.f32 %v474, %v484
        %v487 = vadd.f32 %v475, %v484
        %v488 = vadd.f32 %v476, %v484
        %v489 = vadd.f32 %v477, %v484
        %v490 = vadd.f32 %v478, %v484
        %v491 = vadd.f32 %v479, %v484
        %v492 = vadd.f32 %v480, %v484
        %v493 = vadd.f32 %v481, %v484
        %494 = vst [vmem:[%s251] sm:$0xff] %v486
        %495 = vst [vmem:[%s251 + $0x8] sm:$0xff] %v487
        %496 = vst [vmem:[%s251 + $0x10] sm:$0xff] %v488
        %497 = vst [vmem:[%s251 + $0x18] sm:$0xff] %v489
        %498 = vst [vmem:[%s251 + $0x20] sm:$0xff] %v490
        %499 = vst [vmem:[%s251 + $0x28] sm:$0xff] %v491
        %500 = vst [vmem:[%s251 + $0x30] sm:$0xff] %v492
        %501 = vst [vmem:[%s251 + $0x38] sm:$0xff] %v493
        %s502 = sand.u32 %s149, 1
        %s503 = scalar_lea.sflag [#allocation8], %s502
        %s504 = sand.u32 %s149, 1
        %s505 = smul.addr %s504, 64
        %s506 = scalar_lea.vmem [#allocation11], %s505
        // Predicated region
        $region56: #{tpu_custom_call.1} parent=39 // pred_check
          %p507 = pneg %p159
        $region57: #{tpu_custom_call.1} parent=39 // pred_check_branch
          %509 = sbr.rel (%p507) target = $region59
        $region58: #{tpu_custom_call.1} parent=39 // pred_region
          %s510 = smul.u32 8, %s36
          %512 = vsyncadd %s503, 0
          %s513 = smul.addr %s510, 8
          %s514 = scalar_lea.hbm %s7, %s513
          %s515 = sshll.u32 %s506, 4
          %s516 = int_to_ptr.vmem [resolvable:$true] %s515
          %s517 = sshll.u32 %s514, 4
          %s518 = int_to_ptr.hbm [resolvable:$true] %s517
          %523 = dma.vmem_to_hbm [thread:$0]  %s516, 1024, %s518, %s503, 128, 128, 8
        $region59: #{tpu_custom_call.1} parent=39 // pred_fallthru
          _
      $region40: #{tpu_custom_call.1} parent=5 // pred_fallthru
        _
      %p524 = scmp.le.s32.totalorder 2, %s31
      // Predicated region
      $region60: #{tpu_custom_call.1} parent=5 // pred_check
        %p525 = pneg %p524
      $region61: #{tpu_custom_call.1} parent=5 // pred_check_branch
        %527 = sbr.rel (%p525) target = $region63
      $region62: #{tpu_custom_call.1} parent=5 // pred_region
        %s528 = ssub.s32 %s31, 2
        // Predicated region
        $region64: #{tpu_custom_call.1} parent=62 // pred_check
          %p529 = pneg %p165
        $region65: #{tpu_custom_call.1} parent=62 // pred_check_branch
          %531 = sbr.rel (%p529) target = $region67
        $region66: #{tpu_custom_call.1} parent=62 // pred_region
          %s532 = sand.u32 %s150, 1
          %s533 = scalar_lea.sflag [#allocation8], %s532
          %s534 = sand.u32 %s150, 1
          %s535 = smul.addr %s534, 64
          %s536 = scalar_lea.vmem [#allocation11], %s535
          %538 = dma.done %s533, 1024
        $region67: #{tpu_custom_call.1} parent=62 // pred_fallthru
          _
      $region63: #{tpu_custom_call.1} parent=5 // pred_fallthru
        _
    $region6: #{tpu_custom_call.1} parent=1 // loop_footer
      %s35 = sadd.s32 1, %s31
    $region7: #{tpu_custom_call.1} parent=1 // loop_footer_branch
      %30 = sbr.rel target = $region3
    $region8: #{tpu_custom_call.1} parent=1 // loop_exit
      _
    %539 = vsyncpa [#allocation7], 1
    %s540 = scalar_lea.sflag [#allocation7], 1
    %541 = vsyncpa %s540, 1
    %542 = vsyncpa [#allocation10], 1
    %543 = vsyncpa [#allocation8], 1
    %s544 = scalar_lea.sflag [#allocation8], 1
    %545 = vsyncpa %s544, 1

</llo_original>
